<compile_context>
chip_gen: v7x
topology: tpu7x:2x2x1
jax: 0.10.0
libtpu: 0.0.40
codegen_flags: <defaults>
</compile_context>

<pallas_src>
import jax
import jax.numpy as jnp
from jax.experimental import pallas as pl
from jax.experimental.pallas import tpu as pltpu

D_IN = 16   # in_embed_size
D_OUT = 8   # out_embed_size


def _round_up(x, mult):
    return (x + mult - 1) // mult * mult


def _vmem_capacity_bytes():
    # ~64 MiB per TensorCore on v7x, 128 MiB on v5e/v6e; fall back conservatively.
    try:
        info = pltpu.get_tpu_info()
        cap = getattr(info, "vmem_capacity_bytes", None)
        if cap:
            return int(cap)
    except Exception:
        pass
    return 64 << 20


def _vmem_budget_bytes():
    # Tile-sizing budget: ~3/8 of physical VMEM (~24 MiB on v7x, ~48 MiB on
    # v5e/v6e), leaving headroom for compiler scratch under the scoped limit.
    return max(8 << 20, (_vmem_capacity_bytes() * 3) // 8)


def _vmem_limit_bytes():
    # Explicit scoped-VMEM limit (defaults are only 16/32 MiB on v5e/v6e).
    return min((_vmem_capacity_bytes() * 3) // 4, 96 << 20)


# ---------- Pallas kernel 1: fused Q/K/V SPD transform (Kronecker form) ----------
def _spd_transform_kernel(x_ref, m_ref, o_ref):
    # (tile_n, d_in^2) @ (d_in^2, round_up(3*d_out^2, 128)): one full-width MXU
    # matmul per grid step, bf16 operands, f32 accumulation, lane-dense stores.
    o_ref[...] = jnp.dot(x_ref[...], m_ref[...],
                         preferred_element_type=jnp.float32)


def spd_transform(x, wq, wk, wv, *, tile_n=None, mxu_dtype=jnp.bfloat16):
    """x: (N, d_in, d_in) SPD -> (Q, K, V), each (N, d_out, d_out), Y = W^T X W."""
    n, d_in, _ = x.shape
    d_out = wq.shape[1]
    dd_in, dd_out = d_in * d_in, d_out * d_out

    # vec_row(W^T X W) = vec_row(X) @ kron(W, W); concatenate the three projections
    # and zero-pad the columns to a multiple of 128 lanes (192 -> 256 here) so every
    # output row is stored with full, unmasked vregs and the MXU N-dim is aligned.
    m_all = jnp.concatenate(
        [jnp.kron(wq, wq), jnp.kron(wk, wk), jnp.kron(wv, wv)], axis=1)
    out_cols = _round_up(3 * dd_out, 128)
    if out_cols != 3 * dd_out:
        m_all = jnp.pad(m_all, ((0, 0), (0, out_cols - 3 * dd_out)))
    m_all = m_all.astype(mxu_dtype)                          # (d_in^2, out_cols)

    x2 = x.reshape(n, dd_in).astype(mxu_dtype)

    n8 = _round_up(n, 8)
    if tile_n is None:
        # Large blocks amortize the ~0.35 us per-grid-step overhead; cap by a
        # generation-aware VMEM budget (half-size budget on v7x's 64 MiB VMEM).
        bytes_per_row = 2 * (dd_in * x2.dtype.itemsize + out_cols * 4)  # dbl-buffered
        budget_rows = (_vmem_budget_bytes() // 2) // max(bytes_per_row, 1)
        tile_n = int(min(n8, 2048, max(8, (budget_rows // 8) * 8)))
    n_pad = _round_up(n, tile_n)
    if n_pad != n:
        x2 = jnp.pad(x2, ((0, n_pad - n), (0, 0)))

    out = pl.pallas_call(
        _spd_transform_kernel,
        out_shape=jax.ShapeDtypeStruct((n_pad, out_cols), jnp.float32),
        grid=(n_pad // tile_n,),
        in_specs=[
            pl.BlockSpec((tile_n, dd_in), lambda i: (i, 0)),
            pl.BlockSpec((dd_in, out_cols), lambda i: (0, 0)),
        ],
        out_specs=pl.BlockSpec((tile_n, out_cols), lambda i: (i, 0)),
        compiler_params=pltpu.CompilerParams(
            dimension_semantics=("parallel",),
            vmem_limit_bytes=_vmem_limit_bytes()),
    )(x2, m_all)

    out = out[:n]
    q = out[:, 0 * dd_out:1 * dd_out].reshape(n, d_out, d_out)
    k = out[:, 1 * dd_out:2 * dd_out].reshape(n, d_out, d_out)
    v = out[:, 2 * dd_out:3 * dd_out].reshape(n, d_out, d_out)
    return q, k, v


# ---- Pallas kernel 2: log-Euclidean distances + softmax + combine (batched) ----
def _attention_kernel(logq_ref, logk_ref, logv_ref, out_ref):
    q = logq_ref[...]                                        # (tb, tj, dd)
    k = logk_ref[...]                                        # (tb, mi, dd)
    v = logv_ref[...]                                        # (tb, mi, dd)
    tb, tj, dd = q.shape
    mi = k.shape[1]

    if mi <= 16:
        # Small-m VPU path (review item: per-matrix MXU calls are <2% utilization):
        # energy by broadcast-subtract-square-reduce over the feature (lane) axis.
        diff = q[:, :, None, :] - k[:, None, :, :]           # (tb, tj, mi, dd)
        energy = jnp.sum(diff * diff, axis=-1)               # (tb, tj, mi)
    else:
        # MXU path for larger m, produced directly in (j, i) orientation.
        qn = jnp.sum(q * q, axis=-1, keepdims=True)          # (tb, tj, 1)
        kn = jnp.sum(k * k, axis=-1)[:, None, :]             # (tb, 1, mi)
        gram = jnp.einsum('bjd,bid->bji', q, k,
                          preferred_element_type=jnp.float32)
        energy = jnp.maximum(qn + kn - 2.0 * gram, 0.0)      # exact value is >= 0

    # scores lie in (0, 1] -> softmax over i (lane axis) needs no max-subtraction.
    scores = 1.0 / (1.0 + jnp.log1p(energy))
    e = jnp.exp(scores)
    p = e * pl.reciprocal(jnp.sum(e, axis=-1, keepdims=True), approx=True)

    if mi <= 16:
        # Unrolled full-lane multiply-adds instead of a K=m MXU matmul.
        acc = p[:, :, 0:1] * v[:, 0:1, :]
        for i in range(1, mi):
            acc = acc + p[:, :, i:i + 1] * v[:, i:i + 1, :]
        out_ref[...] = acc
    else:
        out_ref[...] = jnp.einsum('bji,bid->bjd', p, v,
                                  preferred_element_type=jnp.float32)


def attention_combine(logq, logk, logv, *, tile_b=None, tile_j=None):
    """logq/logk/logv: (bs, m, dd) flattened log-matrices -> (bs, m, dd):
    out[b,j] = sum_i softmax_i(1/(1+log1p(||logq[b,j]-logk[b,i]||_F^2))) * logv[b,i]."""
    bs, m, dd = logq.shape
    lq, lk, lv = (a.astype(jnp.float32) for a in (logq, logk, logv))
    # No feature-dim padding: dd (=64 here) as the full last block dim is legal and
    # halves kernel-2 input HBM traffic vs padding to 128 lanes (perf review).

    # j tile bounds the O(m^2) energy/prob intermediates and the q/out blocks at
    # large m; typical small m uses a single j step.
    if tile_j is None:
        tile_j = m if m <= 256 else 256
    m_pad = _round_up(m, tile_j)
    if m_pad != m:
        lq = jnp.pad(lq, ((0, 0), (0, m_pad - m), (0, 0)))

    # VMEM-budgeted tile_b (review: min(bs,128) ignored m and could blow past
    # v7x's 64 MiB VMEM).  Per batch element: double-buffered q/out + k/v blocks
    # plus live energy/scores/e/p/diff intermediates and the combine accumulator.
    bytes_q_out = 2 * 2 * tile_j * dd * 4
    bytes_k_v = 2 * 2 * m * dd * 4
    inter = (tile_j * m * (dd if m <= 16 else 1) + 4 * tile_j * m + 2 * tile_j * dd) * 4
    per_b = bytes_q_out + bytes_k_v + inter
    if tile_b is None:
        tile_b = int(max(1, min(bs, _vmem_budget_bytes() // max(per_b, 1))))
        # Keep >=2 grid steps (2 TensorCores on v7x) only when there is real work;
        # tiny problems keep one step to avoid per-step overhead (v5e/v6e review item).
        if bs > 1 and tile_b >= bs and bs * m * dd * 4 >= (1 << 20):
            tile_b = (bs + 1) // 2
    bs_pad = _round_up(bs, tile_b)
    if bs_pad != bs:
        pad = ((0, bs_pad - bs), (0, 0), (0, 0))
        lq, lk, lv = jnp.pad(lq, pad), jnp.pad(lk, pad), jnp.pad(lv, pad)

    q_spec = pl.BlockSpec((tile_b, tile_j, dd), lambda b, j: (b, j, 0))
    kv_spec = pl.BlockSpec((tile_b, m, dd), lambda b, j: (b, 0, 0))
    out = pl.pallas_call(
        _attention_kernel,
        out_shape=jax.ShapeDtypeStruct((bs_pad, m_pad, dd), jnp.float32),
        grid=(bs_pad // tile_b, m_pad // tile_j),
        in_specs=[q_spec, kv_spec, kv_spec],
        out_specs=q_spec,
        compiler_params=pltpu.CompilerParams(
            dimension_semantics=("parallel", "parallel"),
            vmem_limit_bytes=_vmem_limit_bytes()),
    )(lq, lk, lv)
    return out[:bs, :m, :]


# --------------------------- matrix log / exp (glue) ----------------------------
# TODO(synk): eigh/SVD has no clean Pallas TPU equivalent; matrix log/exp stay in
# plain JAX (single batched eigh for Q, K and V).
def tensor_log(t, rel_eps=1e-6):
    s, u = jnp.linalg.eigh(t)
    # Clamp eigenvalues (review): near-zero/negative values would give NaN/-inf.
    floor = jnp.maximum(rel_eps * jnp.max(s, axis=-1, keepdims=True), 1e-30)
    s = jnp.maximum(s, floor)
    return jnp.einsum('...ij,...j,...kj->...ik', u, jnp.log(s), u)


def tensor_exp(t):
    s, u = jnp.linalg.eigh(t)
    return jnp.einsum('...ij,...j,...kj->...ik', u, jnp.exp(s), u)


# -------------------------------- full forward ----------------------------------
def attention_manifold_forward(x, wq, wk, wv, *, mxu_dtype=jnp.bfloat16):
    """x: (bs, m, d_in, d_in) SPD matrices.  Returns (output, shape_out) like the
    PyTorch module: output (bs*m, d_out, d_out), shape_out = [bs, m, -1]."""
    bs, m, d_in, _ = x.shape
    d_out = wq.shape[1]
    x_flat = x.reshape(bs * m, d_in, d_in).astype(jnp.float32)

    q, k, v = spd_transform(x_flat, wq, wk, wv, mxu_dtype=mxu_dtype)  # kernel 1

    # One batched eigh for log(Q), log(K), log(V).
    log_qkv = tensor_log(jnp.stack([q, k, v], axis=0))       # (3, bs*m, do, do)
    logQ = log_qkv[0].reshape(bs, m, d_out * d_out)
    logK = log_qkv[1].reshape(bs, m, d_out * d_out)
    logV = log_qkv[2].reshape(bs, m, d_out * d_out)

    out_log = attention_combine(logQ, logK, logV)            # kernel 2
    out = tensor_exp(out_log.reshape(bs, m, d_out, d_out))

    shape_out = [bs, m, -1]
    return out.reshape(bs * m, d_out, d_out), shape_out


# -------------------- pure-JAX golden reference (literal op order) ---------------
def _reference_forward(x, wq, wk, wv):
    # Literal transcription of the PyTorch forward (repeat / view / Softmax(dim=-2)
    # / permute plumbing kept 1:1) used to verify the Pallas attention orientation.
    bs, m, d_in, _ = x.shape
    d_out = wq.shape[1]
    xf = x.reshape(bs * m, d_in, d_in).astype(jnp.float32)

    def t_log(t):
        s, u = jnp.linalg.eigh(t)
        return jnp.einsum('...ij,...j,...kj->...ik', u, jnp.log(s), u)

    def t_exp(t):
        s, u = jnp.linalg.eigh(t)
        return jnp.einsum('...ij,...j,...kj->...ik', u, jnp.exp(s), u)

    def spd_trans(w):
        return jnp.einsum('ai,nab,bj->nij', w, xf, w).reshape(bs, m, d_out, d_out)

    Q, K, V = spd_trans(wq), spd_trans(wk), spd_trans(wv)

    def log_euclidean_distance(A, B):
        d = t_log(A) - t_log(B)
        m2 = d @ jnp.swapaxes(d, -1, -2)
        # Sum of singular values of the symmetric PSD D D^T == sum |eigenvalues|.
        return jnp.sum(jnp.abs(jnp.linalg.eigvalsh(m2)), axis=-1)

    Q_expand = jnp.tile(Q, (1, m, 1, 1))                      # Q.repeat(1, m, 1, 1)
    K_expand = jnp.repeat(K, m, axis=1)                       # unsqueeze(2).repeat.view
    energy = log_euclidean_distance(Q_expand, K_expand).reshape(bs, m, m)
    prob = jax.nn.softmax(1.0 / (1.0 + jnp.log(1.0 + energy)), axis=-2)
    prob = jnp.transpose(prob, (0, 2, 1))                     # permute(0, 2, 1)
    cov_log = t_log(V).reshape(bs, m, d_out * d_out)
    out_log = (prob @ cov_log).reshape(bs, m, d_out, d_out)
    return t_exp(out_log).reshape(bs * m, d_out, d_out)


# ------------------------------------ main --------------------------------------
if __name__ == "__main__":
    key = jax.random.PRNGKey(0)
    k_x, k_q, k_k, k_v = jax.random.split(key, 4)

    bs, m = 2, 4   # x: (2, 4, 16, 16)

    # Deterministic, well-conditioned SPD inputs with a per-token scale spread so
    # the attention map is far from uniform (makes the golden check sensitive to
    # any softmax-axis / orientation mistake).
    A = jax.random.normal(k_x, (bs, m, D_IN, D_IN), dtype=jnp.float32)
    base = jnp.einsum('bmij,bmkj->bmik', A, A) / D_IN + 0.5 * jnp.eye(D_IN, dtype=jnp.float32)
    scale = (1.5 ** jnp.arange(m, dtype=jnp.float32))[None, :, None, None]
    x = base * scale

    # SPDTransform weights: orthonormal-column (Stiefel) init, deterministic.
    def ortho(k):
        w = jax.random.normal(k, (D_IN, D_OUT), dtype=jnp.float32)
        qm, _ = jnp.linalg.qr(w)
        return qm[:, :D_OUT]

    wq, wk, wv = ortho(k_q), ortho(k_k), ortho(k_v)

    ref = jax.block_until_ready(_reference_forward(x, wq, wk, wv))

    # f32 MXU path: tight golden-value check of the full Pallas pipeline.
    out_f32, shape_out = attention_manifold_forward(x, wq, wk, wv, mxu_dtype=jnp.float32)
    out_f32 = jax.block_until_ready(out_f32)
    err_f32 = float(jnp.max(jnp.abs(out_f32 - ref) / (1.0 + jnp.abs(ref))))
    assert shape_out == [bs, m, -1]
    assert out_f32.shape == (bs * m, D_OUT, D_OUT)
    assert err_f32 < 2e-2, f"f32 path mismatch vs reference: {err_f32}"

    # Default fast path: bf16 MXU operands with f32 accumulation (perf review).
    out, shape_out = attention_manifold_forward(x, wq, wk, wv)
    out = jax.block_until_ready(out)
    err_bf16 = float(jnp.max(jnp.abs(out - ref) / (1.0 + jnp.abs(ref))))
    assert out.shape == (bs * m, D_OUT, D_OUT)
    assert shape_out == [bs, m, -1]
    assert bool(jnp.all(jnp.isfinite(out)))
    # outputs are SPD -> numerically symmetric
    assert bool(jnp.max(jnp.abs(out - jnp.swapaxes(out, -1, -2))) < 1e-3)
    assert err_bf16 < 2.5e-1, f"bf16 path drifted too far from reference: {err_bf16}"

    print("KERNEL_OK")
</pallas_src>

<mosaic_0001>
module attributes {stable_mosaic.version = 11 : i64} {
  func.func @_spd_transform_kernel(%arg0: i32, %arg1: memref<8x256xf32, #tpu.memory_space<vmem>>, %arg2: memref<256x256xf32, #tpu.memory_space<vmem>>, %arg3: memref<8x256xf32, #tpu.memory_space<vmem>>) attributes {dimension_semantics = [#tpu.dimension_semantics<parallel>], iteration_bounds = array<i64: 1>, scalar_prefetch = 0 : i64, scratch_operands = 0 : i64, tpu.core_type = #tpu.core_type<tc>, window_params = [{transform_indices = @transform_0, window_bounds = array<i64: 8, 256>}, {pipeline_mode = #tpu.pipeline_mode<synchronous>, transform_indices = @transform_1, window_bounds = array<i64: 256, 256>}, {transform_indices = @transform_2, window_bounds = array<i64: 8, 256>}]} {
    %c0 = arith.constant 0 : index
    %c0_0 = arith.constant 0 : index
    %0 = vector.load %arg1[%c0, %c0_0] : memref<8x256xf32, #tpu.memory_space<vmem>>, vector<8x256xf32>
    %c0_1 = arith.constant 0 : index
    %c0_2 = arith.constant 0 : index
    %1 = vector.load %arg2[%c0_1, %c0_2] : memref<256x256xf32, #tpu.memory_space<vmem>>, vector<256x256xf32>
    %cst = arith.constant dense<0.000000e+00> : vector<8x256xf32>
    %2 = tpu.matmul %0, %1, %cst {dimension_numbers = #tpu.dot_dimension_numbers<[1], [0], [0], [1], [0, 0, 1, 1], [], []>} : vector<8x256xf32>, vector<256x256xf32>, vector<8x256xf32> -> vector<8x256xf32>
    %c0_3 = arith.constant 0 : index
    %c0_4 = arith.constant 0 : index
    %3 = vector.load %arg3[%c0_3, %c0_4] : memref<8x256xf32, #tpu.memory_space<vmem>>, vector<8x256xf32>
    tpu.vector_store %arg3[%c0_3, %c0_4], %2 {strides = array<i32>} : memref<8x256xf32, #tpu.memory_space<vmem>>, vector<8x256xf32>,
    return
  }
  func.func @transform_0(%arg0: i32) -> (i32, i32) {
    %c0_i32 = arith.constant 0 : i32
    %c0_i32_0 = arith.constant 0 : i32
    return %arg0, %c0_i32 : i32, i32
  }
  func.func @transform_1(%arg0: i32) -> (i32, i32) {
    %c0_i32 = arith.constant 0 : i32
    %c0_i32_0 = arith.constant 0 : i32
    %c0_i32_1 = arith.constant 0 : i32
    return %c0_i32, %c0_i32_0 : i32, i32
  }
  func.func @transform_2(%arg0: i32) -> (i32, i32) {
    %c0_i32 = arith.constant 0 : i32
    %c0_i32_0 = arith.constant 0 : i32
    return %arg0, %c0_i32 : i32, i32
  }
}

</mosaic_0001>

<llo_original>
// kernel: tpu_custom_call.1
$region0: #{tpu_custom_call.1}
  #allocation0 [shape = 'u32[]', space=smem, size = 0x4, offset = 0x4, fixed_abs, tag = 'smem constant byte address 0x4 - core index']
  #allocation1 [shape = 'u32[144,128]{1,0:T(1,128)}', space=vmem, size = 0x12000, scoped, tag = 'internal scratch']
  %s0 = inlined_call_operand.hbm [shape: f32[8,256], index: 0, kind: input, shape index: {}]
  %s1 = inlined_call_operand.hbm [shape: f32[256,256], index: 1, kind: input, shape index: {}]
  %s2 = inlined_call_operand.hbm [shape: f32[8,256], index: 2, kind: output, shape index: {}]
  %s3 = sld [smem:[#allocation0]]
  $region26: #{tpu_custom_call.1} parent=0
    _
  %s5 = ssub.s32 1, %s3
  %s6 = scalar_select 0, %s5, %s3
  $region1: #{tpu_custom_call.1} parent=0
    #allocation2 [shape = 'u8[8192]{0}', space=vmem, size = 0x2000, scoped, tag = 'input window, operand 0, single buffered']
    #allocation3 [shape = 's32[1]{0}', space=sflag, size = 0x4, scoped, tag = 'scoped memory for tpu_custom_call.1']
    #allocation4 [shape = 's32[1]{0}', space=sflag, size = 0x4, scoped, tag = 'scoped memory for tpu_custom_call.1']
    #allocation5 [shape = 'u8[262144]{0}', space=vmem, size = 0x40000, scoped, tag = 'input window, operand 1, single buffered']
    #allocation6 [shape = 's32[1]{0}', space=sflag, size = 0x4, scoped, tag = 'scoped memory for tpu_custom_call.1']
    #allocation7 [shape = 'u8[8192]{0}', space=vmem, size = 0x2000, scoped, tag = 'output window, operand 0, single buffered']
    %7 = vsyncpa [#allocation3], 0
    %8 = vsyncpa [#allocation6], 0
    %9 = vsyncpa [#allocation4], 0
    // Predicated region
    $region2: #{tpu_custom_call.1} parent=1 // pred_check
      _
    $region3: #{tpu_custom_call.1} parent=1 // pred_check_branch
      %11 = sbr.rel (0) target = $region5
    $region4: #{tpu_custom_call.1} parent=1 // pred_region
      %s13 = ssub.s32 256, 256
      %14 = vsyncadd [#allocation3], %s13
      %s16 = sshll.u32 [#allocation2], 4
      %s17 = int_to_ptr.vmem [resolvable:$true] %s16
      %19 = dma.hbm_to_vmem [thread:$0]  %s0, 256, %s17, [#allocation3]
    $region5: #{tpu_custom_call.1} parent=1 // pred_fallthru
      _
    // Predicated region
    $region6: #{tpu_custom_call.1} parent=1 // pred_check
      _
    $region7: #{tpu_custom_call.1} parent=1 // pred_check_branch
      %21 = sbr.rel (0) target = $region9
    $region8: #{tpu_custom_call.1} parent=1 // pred_region
      %s23 = ssub.s32 8192, 8192
      %24 = vsyncadd [#allocation6], %s23
      %s25 = sshll.u32 [#allocation5], 4
      %s26 = int_to_ptr.vmem [resolvable:$true] %s25
      %31 = dma.hbm_to_vmem [thread:$0]  %s1, 8192, %s26, [#allocation6], 256, 256, 16
    $region9: #{tpu_custom_call.1} parent=1 // pred_fallthru
      _
    // Predicated region
    $region10: #{tpu_custom_call.1} parent=1 // pred_check
      _
    $region11: #{tpu_custom_call.1} parent=1 // pred_check_branch
      %33 = sbr.rel (0) target = $region13
    $region12: #{tpu_custom_call.1} parent=1 // pred_region
      %34 = dma.done [#allocation3], 256
    $region13: #{tpu_custom_call.1} parent=1 // pred_fallthru
      _
    // Predicated region
    $region14: #{tpu_custom_call.1} parent=1 // pred_check
      _
    $region15: #{tpu_custom_call.1} parent=1 // pred_check_branch
      %36 = sbr.rel (0) target = $region17
    $region16: #{tpu_custom_call.1} parent=1 // pred_region
      %37 = dma.done [#allocation6], 8192
    $region17: #{tpu_custom_call.1} parent=1 // pred_fallthru
      _
    %v38 = vld [vmem:[#allocation2] sm:$0xff]
    %v39 = vld [vmem:[#allocation2 + $0x8] sm:$0xff]
    %v40 = vld [vmem:[#allocation5] sm:$0xff]
    %v41 = vld [vmem:[#allocation5 + $0x8] sm:$0xff]
    %v42 = vld [vmem:[#allocation5 + $0x10] sm:$0xff]
    %v43 = vld [vmem:[#allocation5 + $0x18] sm:$0xff]
    %v44 = vld [vmem:[#allocation5 + $0x20] sm:$0xff]
    %v45 = vld [vmem:[#allocation5 + $0x28] sm:$0xff]
    %v46 = vld [vmem:[#allocation5 + $0x30] sm:$0xff]
    %v47 = vld [vmem:[#allocation5 + $0x38] sm:$0xff]
    %v48 = vld [vmem:[#allocation5 + $0x40] sm:$0xff]
    %v49 = vld [vmem:[#allocation5 + $0x48] sm:$0xff]
    %v50 = vld [vmem:[#allocation5 + $0x50] sm:$0xff]
    %v51 = vld [vmem:[#allocation5 + $0x58] sm:$0xff]
    %v52 = vld [vmem:[#allocation5 + $0x60] sm:$0xff]
    %v53 = vld [vmem:[#allocation5 + $0x68] sm:$0xff]
    %v54 = vld [vmem:[#allocation5 + $0x70] sm:$0xff]
    %v55 = vld [vmem:[#allocation5 + $0x78] sm:$0xff]
    %v56 = vld [vmem:[#allocation5 + $0x80] sm:$0xff]
    %v57 = vld [vmem:[#allocation5 + $0x88] sm:$0xff]
    %v58 = vld [vmem:[#allocation5 + $0x90] sm:$0xff]
    %v59 = vld [vmem:[#allocation5 + $0x98] sm:$0xff]
    %v60 = vld [vmem:[#allocation5 + $0xa0] sm:$0xff]
    %v61 = vld [vmem:[#allocation5 + $0xa8] sm:$0xff]
    %v62 = vld [vmem:[#allocation5 + $0xb0] sm:$0xff]
    %v63 = vld [vmem:[#allocation5 + $0xb8] sm:$0xff]
    %v64 = vld [vmem:[#allocation5 + $0xc0] sm:$0xff]
    %v65 = vld [vmem:[#allocation5 + $0xc8] sm:$0xff]
    %v66 = vld [vmem:[#allocation5 + $0xd0] sm:$0xff]
    %v67 = vld [vmem:[#allocation5 + $0xd8] sm:$0xff]
    %v68 = vld [vmem:[#allocation5 + $0xe0] sm:$0xff]
    %v69 = vld [vmem:[#allocation5 + $0xe8] sm:$0xff]
    %v70 = vld [vmem:[#allocation5 + $0xf0] sm:$0xff]
    %v71 = vld [vmem:[#allocation5 + $0xf8] sm:$0xff]
    %v72 = vld [vmem:[#allocation5 + $0x100] sm:$0xff]
    %v73 = vld [vmem:[#allocation5 + $0x108] sm:$0xff]
    %v74 = vld [vmem:[#allocation5 + $0x110] sm:$0xff]
    %v75 = vld [vmem:[#allocation5 + $0x118] sm:$0xff]
    %v76 = vld [vmem:[#allocation5 + $0x120] sm:$0xff]
    %v77 = vld [vmem:[#allocation5 + $0x128] sm:$0xff]
    %v78 = vld [vmem:[#allocation5 + $0x130] sm:$0xff]
    %v79 = vld [vmem:[#allocation5 + $0x138] sm:$0xff]
    %v80 = vld [vmem:[#allocation5 + $0x140] sm:$0xff]
    %v81 = vld [vmem:[#allocation5 + $0x148] sm:$0xff]
    %v82 = vld [vmem:[#allocation5 + $0x150] sm:$0xff]
    %v83 = vld [vmem:[#allocation5 + $0x158] sm:$0xff]
    %v84 = vld [vmem:[#allocation5 + $0x160] sm:$0xff]
    %v85 = vld [vmem:[#allocation5 + $0x168] sm:$0xff]
    %v86 = vld [vmem:[#allocation5 + $0x170] sm:$0xff]
    %v87 = vld [vmem:[#allocation5 + $0x178] sm:$0xff]
    %v88 = vld [vmem:[#allocation5 + $0x180] sm:$0xff]
    %v89 = vld [vmem:[#allocation5 + $0x188] sm:$0xff]
    %v90 = vld [vmem:[#allocation5 + $0x190] sm:$0xff]
    %v91 = vld [vmem:[#allocation5 + $0x198] sm:$0xff]
    %v92 = vld [vmem:[#allocation5 + $0x1a0] sm:$0xff]
    %v93 = vld [vmem:[#allocation5 + $0x1a8] sm:$0xff]
    %v94 = vld [vmem:[#allocation5 + $0x1b0] sm:$0xff]
    %v95 = vld [vmem:[#allocation5 + $0x1b8] sm:$0xff]
    %v96 = vld [vmem:[#allocation5 + $0x1c0] sm:$0xff]
    %v97 = vld [vmem:[#allocation5 + $0x1c8] sm:$0xff]
    %v98 = vld [vmem:[#allocation5 + $0x1d0] sm:$0xff]
    %v99 = vld [vmem:[#allocation5 + $0x1d8] sm:$0xff]
    %v100 = vld [vmem:[#allocation5 + $0x1e0] sm:$0xff]
    %v101 = vld [vmem:[#allocation5 + $0x1e8] sm:$0xff]
    %v102 = vld [vmem:[#allocation5 + $0x1f0] sm:$0xff]
    %v103 = vld [vmem:[#allocation5 + $0x1f8] sm:$0xff]
    %104 = vmatprep.subr.mxu0 %v41
    %105 = vmatpush1.msra.mxu0 %v40
    %106 = vmatprep.subr.mxu0 %v43
    %107 = vmatpush1.msra.mxu0 %v42
    %108 = vmatprep.subr.mxu0 %v45
    %109 = vmatpush1.msra.mxu0 %v44
    %110 = vmatprep.subr.mxu0 %v47
    %111 = vmatpush1.msra.mxu0 %v46
    %112 = vmatprep.subr.mxu0 %v49
    %113 = vmatpush1.msra.mxu0 %v48
    %114 = vmatprep.subr.mxu0 %v51
    %115 = vmatpush1.msra.mxu0 %v50
    %116 = vmatprep.subr.mxu0 %v53
    %117 = vmatpush1.msra.mxu0 %v52
    %118 = vmatprep.subr.mxu0 %v55
    %119 = vmatpush1.msra.mxu0 %v54
    %120 = vmatprep.subr.mxu0 %v57
    %121 = vmatpush1.msra.mxu0 %v56
    %122 = vmatprep.subr.mxu0 %v59
    %123 = vmatpush1.msra.mxu0 %v58
    %124 = vmatprep.subr.mxu0 %v61
    %125 = vmatpush1.msra.mxu0 %v60
    %126 = vmatprep.subr.mxu0 %v63
    %127 = vmatpush1.msra.mxu0 %v62
    %128 = vmatprep.subr.mxu0 %v65
    %129 = vmatpush1.msra.mxu0 %v64
    %130 = vmatprep.subr.mxu0 %v67
    %131 = vmatpush1.msra.mxu0 %v66
    %132 = vmatprep.subr.mxu0 %v69
    %133 = vmatpush1.msra.mxu0 %v68
    %134 = vmatprep.subr.mxu0 %v71
    %135 = vmatpush1.msra.mxu0 %v70
    %136 = vmatprep.subr.mxu0 %v73
    %137 = vmatpush1.msra.mxu0 %v72
    %138 = vmatprep.subr.mxu0 %v75
    %139 = vmatpush1.msra.mxu0 %v74
    %140 = vmatprep.subr.mxu0 %v77
    %141 = vmatpush1.msra.mxu0 %v76
    %142 = vmatprep.subr.mxu0 %v79
    %143 = vmatpush1.msra.mxu0 %v78
    %144 = vmatprep.subr.mxu0 %v81
    %145 = vmatpush1.msra.mxu0 %v80
    %146 = vmatprep.subr.mxu0 %v83
    %147 = vmatpush1.msra.mxu0 %v82
    %148 = vmatprep.subr.mxu0 %v85
    %149 = vmatpush1.msra.mxu0 %v84
    %150 = vmatprep.subr.mxu0 %v87
    %151 = vmatpush1.msra.mxu0 %v86
    %152 = vmatprep.subr.mxu0 %v89
    %153 = vmatpush1.msra.mxu0 %v88
    %154 = vmatprep.subr.mxu0 %v91
    %155 = vmatpush1.msra.mxu0 %v90
    %156 = vmatprep.subr.mxu0 %v93
    %157 = vmatpush1.msra.mxu0 %v92
    %158 = vmatprep.subr.mxu0 %v95
    %159 = vmatpush1.msra.mxu0 %v94
    %160 = vmatprep.subr.mxu0 %v97
    %161 = vmatpush1.msra.mxu0 %v96
    %162 = vmatprep.subr.mxu0 %v99
    %163 = vmatpush1.msra.mxu0 %v98
    %164 = vmatprep.subr.mxu0 %v101
    %165 = vmatpush1.msra.mxu0 %v100
    %166 = vmatprep.subr.mxu0 %v103
    %167 = vmatpush1.msra.mxu0 %v102
    %168 = vmatprep.mubr.f32.mxu0 %v39
    %169 = vmatmul.mubr.f32.gmra.mrb[0].mxu0 %v38
    %v170 = vpop.f32.mrb[0].mxu0
    %v171 = vadd.f32 0.0, %v170
    %v172 = vpop.f32.mrb[0].mxu0
    %v173 = vadd.f32 0.0, %v172
    %174 = vdwg.mxu0
    %175 = vst [vmem:[#allocation7] sm:$0xff] %v171
    %176 = vst [vmem:[#allocation7 + $0x8] sm:$0xff] %v173
    // Predicated region
    $region18: #{tpu_custom_call.1} parent=1 // pred_check
      _
    $region19: #{tpu_custom_call.1} parent=1 // pred_check_branch
      %178 = sbr.rel (0) target = $region21
    $region20: #{tpu_custom_call.1} parent=1 // pred_region
      %s180 = ssub.s32 256, 256
      %181 = vsyncadd [#allocation4], %s180
      %s183 = sshll.u32 [#allocation7], 4
      %s184 = int_to_ptr.vmem [resolvable:$true] %s183
      %186 = dma.vmem_to_hbm [thread:$0]  %s184, 256, %s2, [#allocation4]
    $region21: #{tpu_custom_call.1} parent=1 // pred_fallthru
      _
    // Predicated region
    $region22: #{tpu_custom_call.1} parent=1 // pred_check
      _
    $region23: #{tpu_custom_call.1} parent=1 // pred_check_branch
      %188 = sbr.rel (0) target = $region25
    $region24: #{tpu_custom_call.1} parent=1 // pred_region
      %189 = dma.done [#allocation4], 256
    $region25: #{tpu_custom_call.1} parent=1 // pred_fallthru
      _
    %190 = vsyncpa [#allocation3], 1
    %191 = vsyncpa [#allocation6], 1
    %192 = vsyncpa [#allocation4], 1

</llo_original>
